<compile_context>
chip_gen: v7x
topology: tpu7x:2x2x1
jax: 0.10.0
libtpu: 0.0.40
codegen_flags: <defaults>
</compile_context>

<pallas_src>
import functools

import jax
import jax.numpy as jnp
from jax.experimental import pallas as pl
from jax.experimental.pallas import tpu as pltpu


def mlp_kernel(compute_dtype, x_ref, w1_ref, b1_ref, w2_ref, b2_ref,
               w3_ref, b3_ref, w4t_ref, b4_ref, o_ref):
    # x arrives in its native dtype (usually f32); cast to the MXU operand
    # dtype in-register (VPU, effectively free) instead of paying a separate
    # XLA cast pass over x in HBM before the kernel.
    x = x_ref[...].astype(compute_dtype)

    # Layer 1: (tb, D) @ (D, 256) + b1 -> ReLU    (MXU, f32 accumulate)
    h = jnp.dot(x, w1_ref[...], preferred_element_type=jnp.float32)
    h = jnp.maximum(h + b1_ref[...], 0.0)
    # TODO(synk): dropout layers are identity in eval mode; training-mode
    # stochastic dropout (pltpu.prng_*) intentionally omitted.

    # Layer 2: (tb, 256) @ (256, 128) + b2 -> ReLU
    h = jnp.dot(h.astype(compute_dtype), w2_ref[...],
                preferred_element_type=jnp.float32)
    h = jnp.maximum(h + b2_ref[...], 0.0)

    # Layer 3: (tb, 128) @ (128, 64) + b3 -> ReLU
    h = jnp.dot(h.astype(compute_dtype), w3_ref[...],
                preferred_element_type=jnp.float32)
    h = jnp.maximum(h + b3_ref[...], 0.0)

    # Layer 4 (64 -> 1): elementwise multiply + cross-lane reduce on VPU/XLU
    # instead of an N=1 MXU matmul (which would use 1/256 of the output lanes
    # and still pay a full MXU push/pop).
    out = jnp.sum(h * w4t_ref[...], axis=-1, keepdims=True) + b4_ref[...]
    o_ref[...] = out.astype(o_ref.dtype)


def _choose_tb(batch):
    """Batch tile: fill the MXU M dimension when the batch allows, while
    keeping the grid at >=2 steps so v7x's two TensorCores can both take work
    on the 'parallel' batch axis."""
    for tile in (512, 256, 128):
        if batch >= 2 * tile:
            return tile
    # Small batch: two tiles, rounded up to the 8-row sublane granule.
    half = (batch + 1) // 2
    return max(8, ((half + 7) // 8) * 8)


def simple_nn_forward(x, params, *, compute_dtype=jnp.bfloat16, tb=None):
    """Fused SimpleNN forward. x: (B, input_dim) float32 -> (B, 1) float32."""
    w1, b1, w2, b2, w3, b3, w4, b4 = params
    B, D = x.shape

    # Pick the batch tile and zero-pad ragged batches up to a tile multiple.
    # (The feature dim is NOT padded: the block spans the full D extent.)
    if tb is None:
        tb = _choose_tb(B)
    B_pad = ((B + tb - 1) // tb) * tb
    if B_pad != B:
        x = jnp.pad(x, ((0, B_pad - B), (0, 0)))

    # Weights in the MXU operand dtype (one-time, tiny); biases and the
    # 64->1 head stay float32.  x keeps its native dtype (cast in-kernel).
    w1c = w1.astype(compute_dtype)
    w2c = w2.astype(compute_dtype)
    w3c = w3.astype(compute_dtype)
    b1f = b1.astype(jnp.float32)
    b2f = b2.astype(jnp.float32)
    b3f = b3.astype(jnp.float32)
    w4t = w4.T.astype(jnp.float32)          # (1, 64) row for the VPU reduce
    b4f = b4.astype(jnp.float32)            # (1, 1)

    full = lambda a: pl.BlockSpec(a.shape, lambda i: (0, 0))

    out = pl.pallas_call(
        functools.partial(mlp_kernel, compute_dtype),
        out_shape=jax.ShapeDtypeStruct((B_pad, 1), jnp.float32),
        grid_spec=pltpu.PrefetchScalarGridSpec(
            num_scalar_prefetch=0,
            grid=(B_pad // tb,),
            in_specs=[
                pl.BlockSpec((tb, D), lambda i: (i, 0)),  # x batch tile
                full(w1c), full(b1f),
                full(w2c), full(b2f),
                full(w3c), full(b3f),
                full(w4t), full(b4f),
            ],
            out_specs=pl.BlockSpec((tb, 1), lambda i: (i, 0)),
        ),
        compiler_params=pltpu.CompilerParams(
            dimension_semantics=("parallel",)),
    )(x, w1c, b1f, w2c, b2f, w3c, b3f, w4t, b4f)

    return out[:B]


def init_params(key, input_dim):
    """Deterministic parameter init (uniform, PyTorch-Linear-style bounds)."""
    dims = [(input_dim, 256), (256, 128), (128, 64), (64, 1)]
    params = []
    keys = jax.random.split(key, 2 * len(dims))
    for li, (fan_in, fan_out) in enumerate(dims):
        bound = 1.0 / jnp.sqrt(fan_in)
        w = jax.random.uniform(keys[2 * li], (fan_in, fan_out),
                               minval=-bound, maxval=bound, dtype=jnp.float32)
        b = jax.random.uniform(keys[2 * li + 1], (1, fan_out),
                               minval=-bound, maxval=bound, dtype=jnp.float32)
        params.extend([w, b])
    return tuple(params)


if __name__ == "__main__":
    key = jax.random.PRNGKey(0)
    k_x, k_p = jax.random.split(key)

    batch, input_dim = 16, 32
    x = jax.random.normal(k_x, (batch, input_dim), dtype=jnp.float32)
    params = init_params(k_p, input_dim)

    # Pure-JAX reference (dropout = identity in eval mode).
    w1, b1, w2, b2, w3, b3, w4, b4 = params
    h = jnp.maximum(x @ w1 + b1, 0.0)
    h = jnp.maximum(h @ w2 + b2, 0.0)
    h = jnp.maximum(h @ w3 + b3, 0.0)
    ref = h @ w4 + b4

    # Strict check on the f32 compute path.
    out_f32 = simple_nn_forward(x, params, compute_dtype=jnp.float32)
    jax.block_until_ready(out_f32)
    assert out_f32.shape == (batch, 1)
    assert jnp.allclose(out_f32, ref, atol=1e-4, rtol=1e-4)

    # Default (bf16 MXU operands, f32 accumulation) path, looser tolerance.
    out_bf16 = simple_nn_forward(x, params)
    jax.block_until_ready(out_bf16)
    assert out_bf16.shape == (batch, 1)
    assert jnp.allclose(out_bf16, ref, atol=5e-2, rtol=5e-2)

    print("KERNEL_OK")
</pallas_src>

<mosaic_0001>
module attributes {stable_mosaic.version = 11 : i64} {
  func.func @mlp_kernel(%arg0: i32, %arg1: memref<8x32xf32, #tpu.memory_space<vmem>>, %arg2: memref<32x256xf32, #tpu.memory_space<vmem>>, %arg3: memref<1x256xf32, #tpu.memory_space<vmem>>, %arg4: memref<256x128xf32, #tpu.memory_space<vmem>>, %arg5: memref<1x128xf32, #tpu.memory_space<vmem>>, %arg6: memref<128x64xf32, #tpu.memory_space<vmem>>, %arg7: memref<1x64xf32, #tpu.memory_space<vmem>>, %arg8: memref<1x64xf32, #tpu.memory_space<vmem>>, %arg9: memref<1x1xf32, #tpu.memory_space<vmem>>, %arg10: memref<8x1xf32, #tpu.memory_space<vmem>>) attributes {dimension_semantics = [#tpu.dimension_semantics<parallel>], iteration_bounds = array<i64: 2>, scalar_prefetch = 0 : i64, scratch_operands = 0 : i64, tpu.core_type = #tpu.core_type<tc>, window_params = [{transform_indices = @transform_0, window_bounds = array<i64: 8, 32>}, {pipeline_mode = #tpu.pipeline_mode<synchronous>, transform_indices = @transform_1, window_bounds = array<i64: 32, 256>}, {pipeline_mode = #tpu.pipeline_mode<synchronous>, transform_indices = @transform_2, window_bounds = array<i64: 1, 256>}, {pipeline_mode = #tpu.pipeline_mode<synchronous>, transform_indices = @transform_3, window_bounds = array<i64: 256, 128>}, {pipeline_mode = #tpu.pipeline_mode<synchronous>, transform_indices = @transform_4, window_bounds = array<i64: 1, 128>}, {pipeline_mode = #tpu.pipeline_mode<synchronous>, transform_indices = @transform_5, window_bounds = array<i64: 128, 64>}, {pipeline_mode = #tpu.pipeline_mode<synchronous>, transform_indices = @transform_6, window_bounds = array<i64: 1, 64>}, {pipeline_mode = #tpu.pipeline_mode<synchronous>, transform_indices = @transform_7, window_bounds = array<i64: 1, 64>}, {pipeline_mode = #tpu.pipeline_mode<synchronous>, transform_indices = @transform_8, window_bounds = array<i64: 1, 1>}, {transform_indices = @transform_9, window_bounds = array<i64: 8, 1>}]} {
    %c0 = arith.constant 0 : index
    %c0_0 = arith.constant 0 : index
    %0 = vector.load %arg1[%c0, %c0_0] : memref<8x32xf32, #tpu.memory_space<vmem>>, vector<8x32xf32>
    %c0_1 = arith.constant 0 : index
    %c0_2 = arith.constant 0 : index
    %1 = vector.load %arg2[%c0_1, %c0_2] : memref<32x256xf32, #tpu.memory_space<vmem>>, vector<32x256xf32>
    %cst = arith.constant dense<0.000000e+00> : vector<8x256xf32>
    %2 = tpu.matmul %0, %1, %cst {dimension_numbers = #tpu.dot_dimension_numbers<[1], [0], [0], [1], [0, 0, 1, 1], [], []>} : vector<8x32xf32>, vector<32x256xf32>, vector<8x256xf32> -> vector<8x256xf32>
    %c0_3 = arith.constant 0 : index
    %c0_4 = arith.constant 0 : index
    %3 = vector.load %arg3[%c0_3, %c0_4] : memref<1x256xf32, #tpu.memory_space<vmem>>, vector<1x256xf32>
    %4 = vector.broadcast %3 : vector<1x256xf32> to vector<8x256xf32>
    %5 = arith.addf %2, %4 : vector<8x256xf32>
    %cst_5 = arith.constant 0.000000e+00 : f32
    %6 = vector.broadcast %cst_5 : f32 to vector<8x256xf32>
    %7 = arith.maximumf %5, %6 : vector<8x256xf32>
    %c0_6 = arith.constant 0 : index
    %c0_7 = arith.constant 0 : index
    %8 = vector.load %arg4[%c0_6, %c0_7] : memref<256x128xf32, #tpu.memory_space<vmem>>, vector<256x128xf32>
    %cst_8 = arith.constant dense<0.000000e+00> : vector<8x128xf32>
    %9 = tpu.matmul %7, %8, %cst_8 {dimension_numbers = #tpu.dot_dimension_numbers<[1], [0], [0], [1], [0, 0, 1, 1], [], []>} : vector<8x256xf32>, vector<256x128xf32>, vector<8x128xf32> -> vector<8x128xf32>
    %c0_9 = arith.constant 0 : index
    %c0_10 = arith.constant 0 : index
    %10 = vector.load %arg5[%c0_9, %c0_10] : memref<1x128xf32, #tpu.memory_space<vmem>>, vector<1x128xf32>
    %11 = vector.broadcast %10 : vector<1x128xf32> to vector<8x128xf32>
    %12 = arith.addf %9, %11 : vector<8x128xf32>
    %cst_11 = arith.constant 0.000000e+00 : f32
    %13 = vector.broadcast %cst_11 : f32 to vector<8x128xf32>
    %14 = arith.maximumf %12, %13 : vector<8x128xf32>
    %c0_12 = arith.constant 0 : index
    %c0_13 = arith.constant 0 : index
    %15 = vector.load %arg6[%c0_12, %c0_13] : memref<128x64xf32, #tpu.memory_space<vmem>>, vector<128x64xf32>
    %cst_14 = arith.constant dense<0.000000e+00> : vector<8x64xf32>
    %16 = tpu.matmul %14, %15, %cst_14 {dimension_numbers = #tpu.dot_dimension_numbers<[1], [0], [0], [1], [0, 0, 1, 1], [], []>} : vector<8x128xf32>, vector<128x64xf32>, vector<8x64xf32> -> vector<8x64xf32>
    %c0_15 = arith.constant 0 : index
    %c0_16 = arith.constant 0 : index
    %17 = vector.load %arg7[%c0_15, %c0_16] : memref<1x64xf32, #tpu.memory_space<vmem>>, vector<1x64xf32>
    %18 = vector.broadcast %17 : vector<1x64xf32> to vector<8x64xf32>
    %19 = arith.addf %16, %18 : vector<8x64xf32>
    %cst_17 = arith.constant 0.000000e+00 : f32
    %20 = vector.broadcast %cst_17 : f32 to vector<8x64xf32>
    %21 = arith.maximumf %19, %20 : vector<8x64xf32>
    %c0_18 = arith.constant 0 : index
    %c0_19 = arith.constant 0 : index
    %22 = vector.load %arg8[%c0_18, %c0_19] : memref<1x64xf32, #tpu.memory_space<vmem>>, vector<1x64xf32>
    %23 = vector.broadcast %22 : vector<1x64xf32> to vector<8x64xf32>
    %24 = arith.mulf %21, %23 : vector<8x64xf32>
    %cst_20 = arith.constant dense<0.000000e+00> : vector<8xf32>
    %25 = vector.multi_reduction <add>, %24, %cst_20 [1] : vector<8x64xf32> to vector<8xf32>
    %26 = vector.shape_cast %25 : vector<8xf32> to vector<8x1xf32>
    %c0_21 = arith.constant 0 : index
    %c0_22 = arith.constant 0 : index
    %27 = vector.load %arg9[%c0_21, %c0_22] : memref<1x1xf32, #tpu.memory_space<vmem>>, vector<1x1xf32>
    %28 = vector.broadcast %27 : vector<1x1xf32> to vector<8x1xf32>
    %29 = arith.addf %26, %28 : vector<8x1xf32>
    %c0_23 = arith.constant 0 : index
    %c0_24 = arith.constant 0 : index
    %30 = vector.load %arg10[%c0_23, %c0_24] : memref<8x1xf32, #tpu.memory_space<vmem>>, vector<8x1xf32>
    tpu.vector_store %arg10[%c0_23, %c0_24], %29 {strides = array<i32>} : memref<8x1xf32, #tpu.memory_space<vmem>>, vector<8x1xf32>,
    return
  }
  func.func @transform_0(%arg0: i32) -> (i32, i32) {
    %c0_i32 = arith.constant 0 : i32
    %c0_i32_0 = arith.constant 0 : i32
    return %arg0, %c0_i32 : i32, i32
  }
  func.func @transform_1(%arg0: i32) -> (i32, i32) {
    %c0_i32 = arith.constant 0 : i32
    %c0_i32_0 = arith.constant 0 : i32
    %c0_i32_1 = arith.constant 0 : i32
    return %c0_i32, %c0_i32_0 : i32, i32
  }
  func.func @transform_2(%arg0: i32) -> (i32, i32) {
    %c0_i32 = arith.constant 0 : i32
    %c0_i32_0 = arith.constant 0 : i32
    %c0_i32_1 = arith.constant 0 : i32
    return %c0_i32, %c0_i32_0 : i32, i32
  }
  func.func @transform_3(%arg0: i32) -> (i32, i32) {
    %c0_i32 = arith.constant 0 : i32
    %c0_i32_0 = arith.constant 0 : i32
    %c0_i32_1 = arith.constant 0 : i32
    return %c0_i32, %c0_i32_0 : i32, i32
  }
  func.func @transform_4(%arg0: i32) -> (i32, i32) {
    %c0_i32 = arith.constant 0 : i32
    %c0_i32_0 = arith.constant 0 : i32
    %c0_i32_1 = arith.constant 0 : i32
    return %c0_i32, %c0_i32_0 : i32, i32
  }
  func.func @transform_5(%arg0: i32) -> (i32, i32) {
    %c0_i32 = arith.constant 0 : i32
    %c0_i32_0 = arith.constant 0 : i32
    %c0_i32_1 = arith.constant 0 : i32
    return %c0_i32, %c0_i32_0 : i32, i32
  }
  func.func @transform_6(%arg0: i32) -> (i32, i32) {
    %c0_i32 = arith.constant 0 : i32
    %c0_i32_0 = arith.constant 0 : i32
    %c0_i32_1 = arith.constant 0 : i32
    return %c0_i32, %c0_i32_0 : i32, i32
  }
  func.func @transform_7(%arg0: i32) -> (i32, i32) {
    %c0_i32 = arith.constant 0 : i32
    %c0_i32_0 = arith.constant 0 : i32
    %c0_i32_1 = arith.constant 0 : i32
    return %c0_i32, %c0_i32_0 : i32, i32
  }
  func.func @transform_8(%arg0: i32) -> (i32, i32) {
    %c0_i32 = arith.constant 0 : i32
    %c0_i32_0 = arith.constant 0 : i32
    %c0_i32_1 = arith.constant 0 : i32
    return %c0_i32, %c0_i32_0 : i32, i32
  }
  func.func @transform_9(%arg0: i32) -> (i32, i32) {
    %c0_i32 = arith.constant 0 : i32
    %c0_i32_0 = arith.constant 0 : i32
    return %arg0, %c0_i32 : i32, i32
  }
}

</mosaic_0001>

<llo_original>
// kernel: tpu_custom_call.1
$region0: #{tpu_custom_call.1}
  #allocation0 [shape = 'u32[]', space=smem, size = 0x4, offset = 0x4, fixed_abs, tag = 'smem constant byte address 0x4 - core index']
  #allocation1 [shape = 'u32[144,128]{1,0:T(1,128)}', space=vmem, size = 0x12000, scoped, tag = 'internal scratch']
  #allocation2 [shape = 'f32[1,1]{1,0:T(1,128)S(1)}', space=vmem, size = 0x200, scoped, tag = 'scoped memory for tpu_custom_call.1']
  %s0 = inlined_call_operand.vmem [shape: f32[16,32], index: 0, kind: input, shape index: {}]
  %s1 = inlined_call_operand.vmem [shape: f32[32,256], index: 1, kind: input, shape index: {}]
  %s2 = inlined_call_operand.vmem [shape: f32[1,256], index: 2, kind: input, shape index: {}]
  %s3 = inlined_call_operand.hbm [shape: f32[256,128], index: 3, kind: input, shape index: {}]
  %s4 = inlined_call_operand.vmem [shape: f32[1,128], index: 4, kind: input, shape index: {}]
  %s5 = inlined_call_operand.vmem [shape: f32[128,64], index: 5, kind: input, shape index: {}]
  %s6 = inlined_call_operand.vmem [shape: f32[1,64], index: 6, kind: input, shape index: {}]
  %s7 = inlined_call_operand.vmem [shape: f32[1,64], index: 7, kind: input, shape index: {}]
  %s8 = inlined_call_operand.<no memory space> [shape: f32[1,1], index: 8, kind: input, shape index: {}]
  %s9 = inlined_call_operand.vmem [shape: f32[16,1], index: 9, kind: output, shape index: {}]
  %s10 = sld [smem:[#allocation0]]
  $region73: #{tpu_custom_call.1} parent=0
    _
  %s12 = ssub.s32 1, %s10
  %s13 = scalar_select 0, %s12, %s10
  %v14 = vstv %s8
  %15 = vst [vmem:[#allocation2] sm:$0x1] %v14
  $region1: #{tpu_custom_call.1} parent=0
    #allocation3 [shape = 'u8[131072]{0}', space=vmem, size = 0x20000, scoped, tag = 'input window, operand 3, single buffered']
    #allocation4 [shape = 's32[2]{0}', space=sflag, size = 0x8, scoped, tag = 'scoped memory for tpu_custom_call.1']
    %16 = vsyncpa [#allocation4], 0
    loop: start=0, step=1, limit=4
    $region2: #{tpu_custom_call.1} parent=1 // loop_pre_header
      _
    $region3: #{tpu_custom_call.1} parent=1 // loop_header
      %s18 = sphi 0, %s22
      %p19 = scmp.ge.s32.totalorder %s18, 4
      %s28 = sphi 0, %s30
      %s31 = sphi 0, %s28
      %s32 = sphi 0, %s31
      %s48 = sphi 0, %s32
      %s52 = sphi 0, %s52
      %s54 = sphi 0, %s52
      %s55 = sphi 0, %s54
      %s69 = sphi 0, %s55
      %s73 = sphi 0, %s73
      %s75 = sphi 0, %s73
      %s76 = sphi 0, %s75
      %s90 = sphi 0, %s76
      %s94 = sphi 0, %s94
      %s96 = sphi 0, %s94
      %s97 = sphi 0, %s96
      %s111 = sphi 0, %s97
      %s115 = sphi 0, %s115
      %s117 = sphi 0, %s115
      %s118 = sphi 0, %s117
      %s132 = sphi 0, %s118
      %s136 = sphi 0, %s136
      %s138 = sphi 0, %s136
      %s139 = sphi 0, %s138
      %s153 = sphi 0, %s139
      %s157 = sphi 0, %s157
      %s159 = sphi 0, %s157
      %s160 = sphi 0, %s159
      %s174 = sphi 0, %s160
      %s178 = sphi 0, %s178
      %s180 = sphi 0, %s178
      %s181 = sphi 0, %s180
      %s195 = sphi 0, %s181
      %s199 = sphi 0, %s199
      %s201 = sphi 0, %s199
      %s202 = sphi 0, %s201
      %s216 = sphi 0, %s202
      %s222 = sphi 0, %s224
      %s225 = sphi 0, %s222
      %s226 = sphi 0, %s225
      %s242 = sphi 0, %s226
    $region4: #{tpu_custom_call.1} parent=1 // loop_header_branch
      %21 = sbr.rel (%p19) target = $region8
    $region5: #{tpu_custom_call.1} parent=1 // loop_body
      %s23 = ssub.s32 %s18, 1
      %s24 = ssub.s32 %s18, 2
      %s25 = sadd.s32 %s18, 1
      %s26 = ssub.s32 %s18, %s25
      %p27 = scmp.eq.s32.totalorder %s26, 0
      %s29 = sadd.s32 %s28, 1
      %s30 = scalar_select %p27, %s28, %s29
      %p33 = pneg %p27
      %p34 = scmp.eq.s32.totalorder %s18, 1
      %p35 = por %p33, %p34
      %p36 = scmp.ne.s32.totalorder %s28, %s31
      %p37 = scmp.eq.s32.totalorder %s18, 0
      %p38 = por %p36, %p37
      %p39 = scmp.ne.s32.totalorder %s28, %s31
      %p40 = scmp.eq.s32.totalorder %s23, 1
      %p41 = por %p39, %p40
      %p42 = scmp.ne.s32.totalorder %s31, %s32
      %p43 = scmp.eq.s32.totalorder %s23, 0
      %p44 = por %p42, %p43
      %p45 = scmp.ne.s32.totalorder %s31, %s32
      %p46 = scmp.eq.s32.totalorder %s24, 1
      %p47 = por %p45, %p46
      %p49 = scmp.ne.s32.totalorder %s32, %s48
      %p50 = scmp.eq.s32.totalorder %s24, 0
      %p51 = por %p49, %p50
      %s53 = sadd.s32 %s52, 1
      %p56 = scmp.eq.s32.totalorder %s18, 1
      %p57 = scmp.ne.s32.totalorder %s52, %s54
      %p58 = scmp.eq.s32.totalorder %s18, 0
      %p59 = por %p57, %p58
      %p60 = scmp.ne.s32.totalorder %s52, %s54
      %p61 = scmp.eq.s32.totalorder %s23, 1
      %p62 = por %p60, %p61
      %p63 = scmp.ne.s32.totalorder %s54, %s55
      %p64 = scmp.eq.s32.totalorder %s23, 0
      %p65 = por %p63, %p64
      %p66 = scmp.ne.s32.totalorder %s54, %s55
      %p67 = scmp.eq.s32.totalorder %s24, 1
      %p68 = por %p66, %p67
      %p70 = scmp.ne.s32.totalorder %s55, %s69
      %p71 = scmp.eq.s32.totalorder %s24, 0
      %p72 = por %p70, %p71
      %s74 = sadd.s32 %s73, 1
      %p77 = scmp.eq.s32.totalorder %s18, 1
      %p78 = scmp.ne.s32.totalorder %s73, %s75
      %p79 = scmp.eq.s32.totalorder %s18, 0
      %p80 = por %p78, %p79
      %p81 = scmp.ne.s32.totalorder %s73, %s75
      %p82 = scmp.eq.s32.totalorder %s23, 1
      %p83 = por %p81, %p82
      %p84 = scmp.ne.s32.totalorder %s75, %s76
      %p85 = scmp.eq.s32.totalorder %s23, 0
      %p86 = por %p84, %p85
      %p87 = scmp.ne.s32.totalorder %s75, %s76
      %p88 = scmp.eq.s32.totalorder %s24, 1
      %p89 = por %p87, %p88
      %p91 = scmp.ne.s32.totalorder %s76, %s90
      %p92 = scmp.eq.s32.totalorder %s24, 0
      %p93 = por %p91, %p92
      %s95 = sadd.s32 %s94, 1
      %p98 = scmp.eq.s32.totalorder %s18, 1
      %p99 = scmp.ne.s32.totalorder %s94, %s96
      %p100 = scmp.eq.s32.totalorder %s18, 0
      %p101 = por %p99, %p100
      %p102 = scmp.ne.s32.totalorder %s94, %s96
      %p103 = scmp.eq.s32.totalorder %s23, 1
      %p104 = por %p102, %p103
      %p105 = scmp.ne.s32.totalorder %s96, %s97
      %p106 = scmp.eq.s32.totalorder %s23, 0
      %p107 = por %p105, %p106
      %p108 = scmp.ne.s32.totalorder %s96, %s97
      %p109 = scmp.eq.s32.totalorder %s24, 1
      %p110 = por %p108, %p109
      %p112 = scmp.ne.s32.totalorder %s97, %s111
      %p113 = scmp.eq.s32.totalorder %s24, 0
      %p114 = por %p112, %p113
      %s116 = sadd.s32 %s115, 1
      %p119 = scmp.eq.s32.totalorder %s18, 1
      %p120 = scmp.ne.s32.totalorder %s115, %s117
      %p121 = scmp.eq.s32.totalorder %s18, 0
      %p122 = por %p120, %p121
      %p123 = scmp.ne.s32.totalorder %s115, %s117
      %p124 = scmp.eq.s32.totalorder %s23, 1
      %p125 = por %p123, %p124
      %p126 = scmp.ne.s32.totalorder %s117, %s118
      %p127 = scmp.eq.s32.totalorder %s23, 0
      %p128 = por %p126, %p127
      %p129 = scmp.ne.s32.totalorder %s117, %s118
      %p130 = scmp.eq.s32.totalorder %s24, 1
      %p131 = por %p129, %p130
      %p133 = scmp.ne.s32.totalorder %s118, %s132
      %p134 = scmp.eq.s32.totalorder %s24, 0
      %p135 = por %p133, %p134
      %s137 = sadd.s32 %s136, 1
      %p140 = scmp.eq.s32.totalorder %s18, 1
      %p141 = scmp.ne.s32.totalorder %s136, %s138
      %p142 = scmp.eq.s32.totalorder %s18, 0
      %p143 = por %p141, %p142
      %p144 = scmp.ne.s32.totalorder %s136, %s138
      %p145 = scmp.eq.s32.totalorder %s23, 1
      %p146 = por %p144, %p145
      %p147 = scmp.ne.s32.totalorder %s138, %s139
      %p148 = scmp.eq.s32.totalorder %s23, 0
      %p149 = por %p147, %p148
      %p150 = scmp.ne.s32.totalorder %s138, %s139
      %p151 = scmp.eq.s32.totalorder %s24, 1
      %p152 = por %p150, %p151
      %p154 = scmp.ne.s32.totalorder %s139, %s153
      %p155 = scmp.eq.s32.totalorder %s24, 0
      %p156 = por %p154, %p155
      %s158 = sadd.s32 %s157, 1
      %p161 = scmp.eq.s32.totalorder %s18, 1
      %p162 = scmp.ne.s32.totalorder %s157, %s159
      %p163 = scmp.eq.s32.totalorder %s18, 0
      %p164 = por %p162, %p163
      %p165 = scmp.ne.s32.totalorder %s157, %s159
      %p166 = scmp.eq.s32.totalorder %s23, 1
      %p167 = por %p165, %p166
      %p168 = scmp.ne.s32.totalorder %s159, %s160
      %p169 = scmp.eq.s32.totalorder %s23, 0
      %p170 = por %p168, %p169
      %p171 = scmp.ne.s32.totalorder %s159, %s160
      %p172 = scmp.eq.s32.totalorder %s24, 1
      %p173 = por %p171, %p172
      %p175 = scmp.ne.s32.totalorder %s160, %s174
      %p176 = scmp.eq.s32.totalorder %s24, 0
      %p177 = por %p175, %p176
      %s179 = sadd.s32 %s178, 1
      %p182 = scmp.eq.s32.totalorder %s18, 1
      %p183 = scmp.ne.s32.totalorder %s178, %s180
      %p184 = scmp.eq.s32.totalorder %s18, 0
      %p185 = por %p183, %p184
      %p186 = scmp.ne.s32.totalorder %s178, %s180
      %p187 = scmp.eq.s32.totalorder %s23, 1
      %p188 = por %p186, %p187
      %p189 = scmp.ne.s32.totalorder %s180, %s181
      %p190 = scmp.eq.s32.totalorder %s23, 0
      %p191 = por %p189, %p190
      %p192 = scmp.ne.s32.totalorder %s180, %s181
      %p193 = scmp.eq.s32.totalorder %s24, 1
      %p194 = por %p192, %p193
      %p196 = scmp.ne.s32.totalorder %s181, %s195
      %p197 = scmp.eq.s32.totalorder %s24, 0
      %p198 = por %p196, %p197
      %s200 = sadd.s32 %s199, 1
      %p203 = scmp.eq.s32.totalorder %s18, 1
      %p204 = scmp.ne.s32.totalorder %s199, %s201
      %p205 = scmp.eq.s32.totalorder %s18, 0
      %p206 = por %p204, %p205
      %p207 = scmp.ne.s32.totalorder %s199, %s201
      %p208 = scmp.eq.s32.totalorder %s23, 1
      %p209 = por %p207, %p208
      %p210 = scmp.ne.s32.totalorder %s201, %s202
      %p211 = scmp.eq.s32.totalorder %s23, 0
      %p212 = por %p210, %p211
      %p213 = scmp.ne.s32.totalorder %s201, %s202
      %p214 = scmp.eq.s32.totalorder %s24, 1
      %p215 = por %p213, %p214
      %p217 = scmp.ne.s32.totalorder %s202, %s216
      %p218 = scmp.eq.s32.totalorder %s24, 0
      %p219 = por %p217, %p218
      %s220 = ssub.s32 %s18, %s25
      %p221 = scmp.eq.s32.totalorder %s220, 0
      %s223 = sadd.s32 %s222, 1
      %s224 = scalar_select %p221, %s222, %s223
      %p227 = pneg %p221
      %p228 = scmp.eq.s32.totalorder %s18, 1
      %p229 = por %p227, %p228
      %p230 = scmp.ne.s32.totalorder %s222, %s225
      %p231 = scmp.eq.s32.totalorder %s18, 0
      %p232 = por %p230, %p231
      %p233 = scmp.ne.s32.totalorder %s222, %s225
      %p234 = scmp.eq.s32.totalorder %s23, 1
      %p235 = por %p233, %p234
      %p236 = scmp.ne.s32.totalorder %s225, %s226
      %p237 = scmp.eq.s32.totalorder %s23, 0
      %p238 = por %p236, %p237
      %p239 = scmp.ne.s32.totalorder %s225, %s226
      %p240 = scmp.eq.s32.totalorder %s24, 1
      %p241 = por %p239, %p240
      %p243 = scmp.ne.s32.totalorder %s226, %s242
      %p244 = scmp.eq.s32.totalorder %s24, 0
      %p245 = por %p243, %p244
      %p246 = scmp.le.s32.totalorder 1, %s18
      %p247 = scmp.lt.s32.totalorder %s18, 3
      %p248 = pnand %p246, %p247
      %p249 = pneg %p248
      // Predicated region
      $region9: #{tpu_custom_call.1} parent=5 // pred_check
        _
      $region10: #{tpu_custom_call.1} parent=5 // pred_check_branch
        %251 = sbr.rel (%p248) target = $region12
      $region11: #{tpu_custom_call.1} parent=5 // pred_region
        %s252 = ssub.s32 %s18, 1
        // Predicated region
        $region13: #{tpu_custom_call.1} parent=11 // pred_check
          %p253 = pneg %p65
        $region14: #{tpu_custom_call.1} parent=11 // pred_check_branch
          %255 = sbr.rel (%p253) target = $region16
        $region15: #{tpu_custom_call.1} parent=11 // pred_region
          _
        $region16: #{tpu_custom_call.1} parent=11 // pred_fallthru
          _
        // Predicated region
        $region17: #{tpu_custom_call.1} parent=11 // pred_check
          %p256 = pneg %p86
        $region18: #{tpu_custom_call.1} parent=11 // pred_check_branch
          %258 = sbr.rel (%p256) target = $region20
        $region19: #{tpu_custom_call.1} parent=11 // pred_region
          _
        $region20: #{tpu_custom_call.1} parent=11 // pred_fallthru
          _
        // Predicated region
        $region21: #{tpu_custom_call.1} parent=11 // pred_check
          %p259 = pneg %p107
        $region22: #{tpu_custom_call.1} parent=11 // pred_check_branch
          %261 = sbr.rel (%p259) target = $region24
        $region23: #{tpu_custom_call.1} parent=11 // pred_region
          %s263 = ssub.s32 4096, 4096
          %264 = vsyncadd [#allocation4], %s263
          %s265 = sshll.u32 [#allocation3], 4
          %s266 = int_to_ptr.vmem [resolvable:$true] %s265
          %271 = dma.hbm_to_vmem [thread:$0]  %s3, 4096, %s266, [#allocation4], 128, 128, 8
        $region24: #{tpu_custom_call.1} parent=11 // pred_fallthru
          _
        // Predicated region
        $region25: #{tpu_custom_call.1} parent=11 // pred_check
          %p272 = pneg %p128
        $region26: #{tpu_custom_call.1} parent=11 // pred_check_branch
          %274 = sbr.rel (%p272) target = $region28
        $region27: #{tpu_custom_call.1} parent=11 // pred_region
          _
        $region28: #{tpu_custom_call.1} parent=11 // pred_fallthru
          _
        // Predicated region
        $region29: #{tpu_custom_call.1} parent=11 // pred_check
          %p275 = pneg %p149
        $region30: #{tpu_custom_call.1} parent=11 // pred_check_branch
          %277 = sbr.rel (%p275) target = $region32
        $region31: #{tpu_custom_call.1} parent=11 // pred_region
          _
        $region32: #{tpu_custom_call.1} parent=11 // pred_fallthru
          _
        // Predicated region
        $region33: #{tpu_custom_call.1} parent=11 // pred_check
          %p278 = pneg %p170
        $region34: #{tpu_custom_call.1} parent=11 // pred_check_branch
          %280 = sbr.rel (%p278) target = $region36
        $region35: #{tpu_custom_call.1} parent=11 // pred_region
          _
        $region36: #{tpu_custom_call.1} parent=11 // pred_fallthru
          _
        // Predicated region
        $region37: #{tpu_custom_call.1} parent=11 // pred_check
          %p281 = pneg %p191
        $region38: #{tpu_custom_call.1} parent=11 // pred_check_branch
          %283 = sbr.rel (%p281) target = $region40
        $region39: #{tpu_custom_call.1} parent=11 // pred_region
          _
        $region40: #{tpu_custom_call.1} parent=11 // pred_fallthru
          _
        // Predicated region
        $region41: #{tpu_custom_call.1} parent=11 // pred_check
          %p284 = pneg %p212
        $region42: #{tpu_custom_call.1} parent=11 // pred_check_branch
          %286 = sbr.rel (%p284) target = $region44
        $region43: #{tpu_custom_call.1} parent=11 // pred_region
          _
        $region44: #{tpu_custom_call.1} parent=11 // pred_fallthru
          _
      $region12: #{tpu_custom_call.1} parent=5 // pred_fallthru
        _
      %p287 = scmp.lt.s32.totalorder %s18, 2
      // Predicated region
      $region45: #{tpu_custom_call.1} parent=5 // pred_check
        %p288 = pneg %p287
      $region46: #{tpu_custom_call.1} parent=5 // pred_check_branch
        %290 = sbr.rel (%p288) target = $region48
      $region47: #{tpu_custom_call.1} parent=5 // pred_region
        // Predicated region
        $region49: #{tpu_custom_call.1} parent=47 // pred_check
          %p291 = pneg %p38
        $region50: #{tpu_custom_call.1} parent=47 // pred_check_branch
          %293 = sbr.rel (%p291) target = $region52
        $region51: #{tpu_custom_call.1} parent=47 // pred_region
          %p294 = scmp.lt.s32.totalorder %s18, 1
          %s295 = scalar_select %p294, %s18, 1
          %s296 = smul.addr %s295, 8
          %s297 = scalar_lea.vmem %s0, %s296
        $region52: #{tpu_custom_call.1} parent=47 // pred_fallthru
          _
      $region48: #{tpu_custom_call.1} parent=5 // pred_fallthru
        _
      %p298 = scmp.le.s32.totalorder 1, %s18
      %p299 = scmp.lt.s32.totalorder %s18, 3
      %p300 = pnand %p298, %p299
      %p301 = pneg %p300
      // Predicated region
      $region53: #{tpu_custom_call.1} parent=5 // pred_check
        _
      $region54: #{tpu_custom_call.1} parent=5 // pred_check_branch
        %303 = sbr.rel (%p300) target = $region56
      $region55: #{tpu_custom_call.1} parent=5 // pred_region
        %s304 = ssub.s32 %s18, 1
        // Predicated region
        $region57: #{tpu_custom_call.1} parent=55 // pred_check
          %p305 = pneg %p107
        $region58: #{tpu_custom_call.1} parent=55 // pred_check_branch
          %307 = sbr.rel (%p305) target = $region60
        $region59: #{tpu_custom_call.1} parent=55 // pred_region
          %308 = dma.done [#allocation4], 4096
        $region60: #{tpu_custom_call.1} parent=55 // pred_fallthru
          _
        %p309 = scmp.lt.s32.totalorder %s23, 1
        %s310 = scalar_select %p309, %s23, 1
        %s311 = smul.addr %s310, 8
        %s312 = scalar_lea.vmem %s0, %s311
        %p313 = pneg %p44
        %p314 = pneg %p41
        %p315 = pneg %p65
        %p316 = pneg %p62
        %p317 = pneg %p86
        %p318 = pneg %p83
        %p319 = pneg %p107
        %p320 = pneg %p104
        %p321 = pneg %p128
        %p322 = pneg %p125
        %p323 = pneg %p149
        %p324 = pneg %p146
        %p325 = pneg %p170
        %p326 = pneg %p167
        %p327 = pneg %p191
        %p328 = pneg %p188
        %p329 = pneg %p212
        %p330 = pneg %p209
        %p331 = pneg %p238
        %p332 = pneg %p235
        %p333 = scmp.lt.s32.totalorder %s23, 1
        %s334 = scalar_select %p333, %s23, 1
        %s335 = smul.addr %s334, 8
        %s336 = scalar_lea.vmem %s9, %s335
        %p337 = scmp.lt.s32.totalorder %s23, 1
        %s338 = scalar_select %p337, %s23, 1
        %s339 = smul.addr %s338, 8
        %s340 = scalar_lea.vmem %s0, %s339
        %p341 = scmp.lt.s32.totalorder %s23, 1
        %s342 = scalar_select %p341, %s23, 1
        %s343 = smul.addr %s342, 8
        %s344 = scalar_lea.vmem %s9, %s343
        %v345 = vld [vmem:[%s340] sm:$0xff]
        %v346 = vld [vmem:[%s1] sm:$0xff]
        %v347 = vld [vmem:[%s1 + $0x8] sm:$0xff]
        %v348 = vld [vmem:[%s1 + $0x10] sm:$0xff]
        %v349 = vld [vmem:[%s1 + $0x18] sm:$0xff]
        %v350 = vld [vmem:[%s1 + $0x20] sm:$0xff]
        %v351 = vld [vmem:[%s1 + $0x28] sm:$0xff]
        %v352 = vld [vmem:[%s1 + $0x30] sm:$0xff]
        %v353 = vld [vmem:[%s1 + $0x38] sm:$0xff]
        %v354 = vld [vmem:[%s2] sm:$0x3]
        %v356 = vlaneseq
        %v357 = vshrl.u32 %v356, 7
        %v358 = vsub.s32 0, %v357
        %v359 = vrot.slane %v354, %v358
        %v360 = vlaneseq
        %v361 = vshrl.u32 %v360, 7
        %v362 = vsub.s32 1, %v361
        %v363 = vrot.slane %v354, %v362
        %vm366 = vcmask 261120
        %v368 = vsel %vm366, %v345, 0
        %370 = vmatprep.subr.mxu0 %v347
        %371 = vmatpush1.msra.mxu0 %v346
        %372 = vmatprep.subr.mxu0 %v349
        %373 = vmatpush1.msra.mxu0 %v348
        %374 = vmatprep.subr.mxu0 %v351
        %375 = vmatpush1.msra.mxu0 %v350
        %376 = vmatprep.subr.mxu0 %v353
        %377 = vmatpush1.msra.mxu0 %v352
        %378 = vmatprep.subr.mxu0 0.0
        %379 = vmatpush1.msra.mxu0 0.0
        %380 = vmatprep.subr.mxu0 0.0
        %381 = vmatpush1.msra.mxu0 0.0
        %382 = vmatprep.subr.mxu0 0.0
        %383 = vmatpush1.msra.mxu0 0.0
        %384 = vmatprep.subr.mxu0 0.0
        %385 = vmatpush1.msra.mxu0 0.0
        %386 = vmatprep.subr.mxu0 0.0
        %387 = vmatpush1.msra.mxu0 0.0
        %388 = vmatprep.subr.mxu0 0.0
        %389 = vmatpush1.msra.mxu0 0.0
        %390 = vmatprep.subr.mxu0 0.0
        %391 = vmatpush1.msra.mxu0 0.0
        %392 = vmatprep.subr.mxu0 0.0
        %393 = vmatpush1.msra.mxu0 0.0
        %394 = vmatprep.subr.mxu0 0.0
        %395 = vmatpush1.msra.mxu0 0.0
        %396 = vmatprep.subr.mxu0 0.0
        %397 = vmatpush1.msra.mxu0 0.0
        %398 = vmatprep.subr.mxu0 0.0
        %399 = vmatpush1.msra.mxu0 0.0
        %400 = vmatprep.subr.mxu0 0.0
        %401 = vmatpush1.msra.mxu0 0.0
        %402 = vmatprep.subr.mxu0 0.0
        %403 = vmatpush1.msra.mxu0 0.0
        %404 = vmatprep.subr.mxu0 0.0
        %405 = vmatpush1.msra.mxu0 0.0
        %406 = vmatprep.subr.mxu0 0.0
        %407 = vmatpush1.msra.mxu0 0.0
        %408 = vmatprep.subr.mxu0 0.0
        %409 = vmatpush1.msra.mxu0 0.0
        %410 = vmatprep.subr.mxu0 0.0
        %411 = vmatpush1.msra.mxu0 0.0
        %412 = vmatprep.subr.mxu0 0.0
        %413 = vmatpush1.msra.mxu0 0.0
        %414 = vmatprep.subr.mxu0 0.0
        %415 = vmatpush1.msra.mxu0 0.0
        %416 = vmatprep.subr.mxu0 0.0
        %417 = vmatpush1.msra.mxu0 0.0
        %418 = vmatprep.subr.mxu0 0.0
        %419 = vmatpush1.msra.mxu0 0.0
        %420 = vmatprep.subr.mxu0 0.0
        %421 = vmatpush1.msra.mxu0 0.0
        %422 = vmatprep.subr.mxu0 0.0
        %423 = vmatpush1.msra.mxu0 0.0
        %424 = vmatprep.subr.mxu0 0.0
        %425 = vmatpush1.msra.mxu0 0.0
        %426 = vmatprep.subr.mxu0 0.0
        %427 = vmatpush1.msra.mxu0 0.0
        %428 = vmatprep.subr.mxu0 0.0
        %429 = vmatpush1.msra.mxu0 0.0
        %430 = vmatprep.subr.mxu0 0.0
        %431 = vmatpush1.msra.mxu0 0.0
        %432 = vmatprep.subr.mxu0 0.0
        %433 = vmatpush1.msra.mxu0 0.0
        %434 = vmatprep.mubr.f32.mxu0 0.0
        %435 = vmatmul.mubr.f32.gmra.mrb[0].mxu0 %v368
        %v436 = vpop.f32.mrb[0].mxu0
        %v437 = vadd.f32 %v359, %v436
        %v438 = vpop.f32.mrb[0].mxu0
        %v439 = vadd.f32 %v363, %v438
        %440 = vdwg.mxu0
        %v441 = vmax.f32 %v437, 0.0
        %v442 = vmax.f32 %v439, 0.0
        %v443 = vld [vmem:[#allocation3] sm:$0xff]
        %v444 = vld [vmem:[#allocation3 + $0x8] sm:$0xff]
        %v445 = vld [vmem:[#allocation3 + $0x10] sm:$0xff]
        %v446 = vld [vmem:[#allocation3 + $0x18] sm:$0xff]
        %v447 = vld [vmem:[#allocation3 + $0x20] sm:$0xff]
        %v448 = vld [vmem:[#allocation3 + $0x28] sm:$0xff]
        %v449 = vld [vmem:[#allocation3 + $0x30] sm:$0xff]
        %v450 = vld [vmem:[#allocation3 + $0x38] sm:$0xff]
        %v451 = vld [vmem:[#allocation3 + $0x40] sm:$0xff]
        %v452 = vld [vmem:[#allocation3 + $0x48] sm:$0xff]
        %v453 = vld [vmem:[#allocation3 + $0x50] sm:$0xff]
        %v454 = vld [vmem:[#allocation3 + $0x58] sm:$0xff]
        %v455 = vld [vmem:[#allocation3 + $0x60] sm:$0xff]
        %v456 = vld [vmem:[#allocation3 + $0x68] sm:$0xff]
        %v457 = vld [vmem:[#allocation3 + $0x70] sm:$0xff]
        %v458 = vld [vmem:[#allocation3 + $0x78] sm:$0xff]
        %v459 = vld [vmem:[#allocation3 + $0x80] sm:$0xff]
        %v460 = vld [vmem:[#allocation3 + $0x88] sm:$0xff]
        %v461 = vld [vmem:[#allocation3 + $0x90] sm:$0xff]
        %v462 = vld [vmem:[#allocation3 + $0x98] sm:$0xff]
        %v463 = vld [vmem:[#allocation3 + $0xa0] sm:$0xff]
        %v464 = vld [vmem:[#allocation3 + $0xa8] sm:$0xff]
        %v465 = vld [vmem:[#allocation3 + $0xb0] sm:$0xff]
        %v466 = vld [vmem:[#allocation3 + $0xb8] sm:$0xff]
        %v467 = vld [vmem:[#allocation3 + $0xc0] sm:$0xff]
        %v468 = vld [vmem:[#allocation3 + $0xc8] sm:$0xff]
        %v469 = vld [vmem:[#allocation3 + $0xd0] sm:$0xff]
        %v470 = vld [vmem:[#allocation3 + $0xd8] sm:$0xff]
        %v471 = vld [vmem:[#allocation3 + $0xe0] sm:$0xff]
        %v472 = vld [vmem:[#allocation3 + $0xe8] sm:$0xff]
        %v473 = vld [vmem:[#allocation3 + $0xf0] sm:$0xff]
        %v474 = vld [vmem:[#allocation3 + $0xf8] sm:$0xff]
        %v475 = vld [vmem:[%s4] sm:$0x1]
        %v477 = vlaneseq
        %v478 = vshrl.u32 %v477, 7
        %v479 = vsub.s32 0, %v478
        %v480 = vrot.slane %v475, %v479
        %482 = vmatprep.subr.mxu0 0.0
        %483 = vmatpush1.msra.mxu0 %v443
        %484 = vmatprep.subr.mxu0 0.0
        %485 = vmatpush1.msra.mxu0 %v444
        %486 = vmatprep.subr.mxu0 0.0
        %487 = vmatpush1.msra.mxu0 %v445
        %488 = vmatprep.subr.mxu0 0.0
        %489 = vmatpush1.msra.mxu0 %v446
        %490 = vmatprep.subr.mxu0 0.0
        %491 = vmatpush1.msra.mxu0 %v447
        %492 = vmatprep.subr.mxu0 0.0
        %493 = vmatpush1.msra.mxu0 %v448
        %494 = vmatprep.subr.mxu0 0.0
        %495 = vmatpush1.msra.mxu0 %v449
        %496 = vmatprep.subr.mxu0 0.0
        %497 = vmatpush1.msra.mxu0 %v450
        %498 = vmatprep.subr.mxu0 0.0
        %499 = vmatpush1.msra.mxu0 %v451
        %500 = vmatprep.subr.mxu0 0.0
        %501 = vmatpush1.msra.mxu0 %v452
        %502 = vmatprep.subr.mxu0 0.0
        %503 = vmatpush1.msra.mxu0 %v453
        %504 = vmatprep.subr.mxu0 0.0
        %505 = vmatpush1.msra.mxu0 %v454
        %506 = vmatprep.subr.mxu0 0.0
        %507 = vmatpush1.msra.mxu0 %v455
        %508 = vmatprep.subr.mxu0 0.0
        %509 = vmatpush1.msra.mxu0 %v456
        %510 = vmatprep.subr.mxu0 0.0
        %511 = vmatpush1.msra.mxu0 %v457
        %512 = vmatprep.subr.mxu0 0.0
        %513 = vmatpush1.msra.mxu0 %v458
        %514 = vmatprep.subr.mxu0 0.0
        %515 = vmatpush1.msra.mxu0 %v459
        %516 = vmatprep.subr.mxu0 0.0
        %517 = vmatpush1.msra.mxu0 %v460
        %518 = vmatprep.subr.mxu0 0.0
        %519 = vmatpush1.msra.mxu0 %v461
        %520 = vmatprep.subr.mxu0 0.0
        %521 = vmatpush1.msra.mxu0 %v462
        %522 = vmatprep.subr.mxu0 0.0
        %523 = vmatpush1.msra.mxu0 %v463
        %524 = vmatprep.subr.mxu0 0.0
        %525 = vmatpush1.msra.mxu0 %v464
        %526 = vmatprep.subr.mxu0 0.0
        %527 = vmatpush1.msra.mxu0 %v465
        %528 = vmatprep.subr.mxu0 0.0
        %529 = vmatpush1.msra.mxu0 %v466
        %530 = vmatprep.subr.mxu0 0.0
        %531 = vmatpush1.msra.mxu0 %v467
        %532 = vmatprep.subr.mxu0 0.0
        %533 = vmatpush1.msra.mxu0 %v468
        %534 = vmatprep.subr.mxu0 0.0
        %535 = vmatpush1.msra.mxu0 %v469
        %536 = vmatprep.subr.mxu0 0.0
        %537 = vmatpush1.msra.mxu0 %v470
        %538 = vmatprep.subr.mxu0 0.0
        %539 = vmatpush1.msra.mxu0 %v471
        %540 = vmatprep.subr.mxu0 0.0
        %541 = vmatpush1.msra.mxu0 %v472
        %542 = vmatprep.subr.mxu0 0.0
        %543 = vmatpush1.msra.mxu0 %v473
        %544 = vmatprep.subr.mxu0 0.0
        %545 = vmatpush1.msra.mxu0 %v474
        %546 = vmatprep.mubr.f32.mxu0 %v442
        %547 = vmatmul.mubr.f32.gmra.mrb[0].mxu0 %v441
        %v548 = vpop.f32.mrb[0].mxu0
        %v549 = vadd.f32 %v480, %v548
        %v550 = vpop.f32.mrb[0].mxu0
        %551 = vdwg.mxu0
        %v552 = vmax.f32 %v549, 0.0
        %v553 = vld [vmem:[%s5] sm:$0xff]
        %v554 = vld [vmem:[%s5 + $0x8] sm:$0xff]
        %v555 = vld [vmem:[%s5 + $0x10] sm:$0xff]
        %v556 = vld [vmem:[%s5 + $0x18] sm:$0xff]
        %v557 = vld [vmem:[%s5 + $0x20] sm:$0xff]
        %v558 = vld [vmem:[%s5 + $0x28] sm:$0xff]
        %v559 = vld [vmem:[%s5 + $0x30] sm:$0xff]
        %v560 = vld [vmem:[%s5 + $0x38] sm:$0xff]
        %v561 = vld [vmem:[%s5 + $0x40] sm:$0xff]
        %v562 = vld [vmem:[%s5 + $0x48] sm:$0xff]
        %v563 = vld [vmem:[%s5 + $0x50] sm:$0xff]
        %v564 = vld [vmem:[%s5 + $0x58] sm:$0xff]
        %v565 = vld [vmem:[%s5 + $0x60] sm:$0xff]
        %v566 = vld [vmem:[%s5 + $0x68] sm:$0xff]
        %v567 = vld [vmem:[%s5 + $0x70] sm:$0xff]
        %v568 = vld [vmem:[%s5 + $0x78] sm:$0xff]
        %v569 = vld [vmem:[%s6] sm:$0x1]
        %v571 = vlaneseq
        %v572 = vshrl.u32 %v571, 7
        %v573 = vsub.s32 0, %v572
        %v574 = vrot.slane %v569, %v573
        %576 = vmatprep.subr.mxu0 0.0
        %577 = vmatpush1.msra.mxu0 %v553
        %578 = vmatprep.subr.mxu0 0.0
        %579 = vmatpush1.msra.mxu0 %v554
        %580 = vmatprep.subr.mxu0 0.0
        %581 = vmatpush1.msra.mxu0 %v555
        %582 = vmatprep.subr.mxu0 0.0
        %583 = vmatpush1.msra.mxu0 %v556
        %584 = vmatprep.subr.mxu0 0.0
        %585 = vmatpush1.msra.mxu0 %v557
        %586 = vmatprep.subr.mxu0 0.0
        %587 = vmatpush1.msra.mxu0 %v558
        %588 = vmatprep.subr.mxu0 0.0
        %589 = vmatpush1.msra.mxu0 %v559
        %590 = vmatprep.subr.mxu0 0.0
        %591 = vmatpush1.msra.mxu0 %v560
        %592 = vmatprep.subr.mxu0 0.0
        %593 = vmatpush1.msra.mxu0 %v561
        %594 = vmatprep.subr.mxu0 0.0
        %595 = vmatpush1.msra.mxu0 %v562
        %596 = vmatprep.subr.mxu0 0.0
        %597 = vmatpush1.msra.mxu0 %v563
        %598 = vmatprep.subr.mxu0 0.0
        %599 = vmatpush1.msra.mxu0 %v564
        %600 = vmatprep.subr.mxu0 0.0
        %601 = vmatpush1.msra.mxu0 %v565
        %602 = vmatprep.subr.mxu0 0.0
        %603 = vmatpush1.msra.mxu0 %v566
        %604 = vmatprep.subr.mxu0 0.0
        %605 = vmatpush1.msra.mxu0 %v567
        %606 = vmatprep.subr.mxu0 0.0
        %607 = vmatpush1.msra.mxu0 %v568
        %608 = vmatprep.subr.mxu0 0.0
        %609 = vmatpush1.msra.mxu0 0.0
        %610 = vmatprep.subr.mxu0 0.0
        %611 = vmatpush1.msra.mxu0 0.0
        %612 = vmatprep.subr.mxu0 0.0
        %613 = vmatpush1.msra.mxu0 0.0
        %614 = vmatprep.subr.mxu0 0.0
        %615 = vmatpush1.msra.mxu0 0.0
        %616 = vmatprep.subr.mxu0 0.0
        %617 = vmatpush1.msra.mxu0 0.0
        %618 = vmatprep.subr.mxu0 0.0
        %619 = vmatpush1.msra.mxu0 0.0
        %620 = vmatprep.subr.mxu0 0.0
        %621 = vmatpush1.msra.mxu0 0.0
        %622 = vmatprep.subr.mxu0 0.0
        %623 = vmatpush1.msra.mxu0 0.0
        %624 = vmatprep.subr.mxu0 0.0
        %625 = vmatpush1.msra.mxu0 0.0
        %626 = vmatprep.subr.mxu0 0.0
        %627 = vmatpush1.msra.mxu0 0.0
        %628 = vmatprep.subr.mxu0 0.0
        %629 = vmatpush1.msra.mxu0 0.0
        %630 = vmatprep.subr.mxu0 0.0
        %631 = vmatpush1.msra.mxu0 0.0
        %632 = vmatprep.subr.mxu0 0.0
        %633 = vmatpush1.msra.mxu0 0.0
        %634 = vmatprep.subr.mxu0 0.0
        %635 = vmatpush1.msra.mxu0 0.0
        %636 = vmatprep.subr.mxu0 0.0
        %637 = vmatpush1.msra.mxu0 0.0
        %638 = vmatprep.subr.mxu0 0.0
        %639 = vmatpush1.msra.mxu0 0.0
        %640 = vmatprep.mubr.f32.mxu0 0.0
        %641 = vmatmul.mubr.f32.gmra.mrb[0].mxu0 %v552
        %v642 = vpop.f32.mrb[0].mxu0
        %v643 = vadd.f32 %v574, %v642
        %v644 = vpop.f32.mrb[0].mxu0
        %645 = vdwg.mxu0
        %v646 = vmax.f32 %v643, 0.0
        %v647 = vld [vmem:[%s7] sm:$0x1]
        %v649 = vlaneseq
        %v650 = vshrl.u32 %v649, 7
        %v651 = vsub.s32 0, %v650
        %v652 = vrot.slane %v647, %v651
        %v654 = vmul.f32 %v646, %v652
        %vm655 = vcmask 523264
        %v656 = vsel %vm655, %v654, 0.0
        %657 = vadd.xlane.f32.xlu0 %v656
        %v658 = vpop.xlane.xlu0 %657
        %v659 = vld [vmem:[#allocation2] sm:$0x1]
        %v661 = vlaneseq
        %v662 = vshrl.u32 %v661, 7
        %v663 = vsub.s32 0, %v662
        %v664 = vrot.slane %v659, %v663
        %v666 = vadd.f32 %v658, %v664
        %vm667 = vcmask 7168
        %668 = vst.msk [vmem:[%s344] sm:$0xff] %vm667, %v666
        %p669 = scmp.lt.s32.totalorder %s23, 1
        %s670 = scalar_select %p669, %s23, 1
        %s671 = smul.addr %s670, 8
        %s672 = scalar_lea.vmem %s9, %s671
        // Predicated region
        $region61: #{tpu_custom_call.1} parent=55 // pred_check
          %p673 = pneg %p235
        $region62: #{tpu_custom_call.1} parent=55 // pred_check_branch
          %675 = sbr.rel (%p673) target = $region64
        $region63: #{tpu_custom_call.1} parent=55 // pred_region
          _
        $region64: #{tpu_custom_call.1} parent=55 // pred_fallthru
          _
      $region56: #{tpu_custom_call.1} parent=5 // pred_fallthru
        _
      %p676 = scmp.le.s32.totalorder 2, %s18
      // Predicated region
      $region65: #{tpu_custom_call.1} parent=5 // pred_check
        %p677 = pneg %p676
      $region66: #{tpu_custom_call.1} parent=5 // pred_check_branch
        %679 = sbr.rel (%p677) target = $region68
      $region67: #{tpu_custom_call.1} parent=5 // pred_region
        %s680 = ssub.s32 %s18, 2
        // Predicated region
        $region69: #{tpu_custom_call.1} parent=67 // pred_check
          %p681 = pneg %p241
        $region70: #{tpu_custom_call.1} parent=67 // pred_check_branch
          %683 = sbr.rel (%p681) target = $region72
        $region71: #{tpu_custom_call.1} parent=67 // pred_region
          %p684 = scmp.lt.s32.totalorder %s24, 1
          %s685 = scalar_select %p684, %s24, 1
          %s686 = smul.addr %s685, 8
          %s687 = scalar_lea.vmem %s9, %s686
        $region72: #{tpu_custom_call.1} parent=67 // pred_fallthru
          _
      $region68: #{tpu_custom_call.1} parent=5 // pred_fallthru
        _
    $region6: #{tpu_custom_call.1} parent=1 // loop_footer
      %s22 = sadd.s32 1, %s18
    $region7: #{tpu_custom_call.1} parent=1 // loop_footer_branch
      %17 = sbr.rel target = $region3
    $region8: #{tpu_custom_call.1} parent=1 // loop_exit
      _
    %688 = vsyncpa [#allocation4], 1
    %s689 = scalar_lea.sflag [#allocation4], 1
    %690 = vsyncpa %s689, 1

</llo_original>
